<compile_context>
chip_gen: v7x
topology: tpu7x:2x2x1
jax: 0.10.0
libtpu: 0.0.40
codegen_flags: <defaults>
</compile_context>

<pallas_src>
import functools

import jax
import jax.numpy as jnp
from jax.experimental import pallas as pl
from jax.experimental.pallas import tpu as pltpu


def _ls_ce_kernel(x_ref, tgt_ref, out_ref, *,
                  smoothing, inv_c, n_total, block_n, ragged):
    confidence = 1.0 - smoothing
    bn, c = x_ref.shape

    # Class-index iota kept (1, C); broadcasting against (BN, 1) targets does
    # the per-element compare without materializing a (BN, C) iota.
    col = jax.lax.broadcasted_iota(jnp.int32, (1, c), 1)
    onehot = col == tgt_ref[...]                                  # (BN, C) bool

    # Fused gather + smooth term:  w = conf * onehot + s/C  (weights sum to 1)
    base_w = jnp.float32(smoothing * inv_c)
    w = jnp.where(onehot, jnp.float32(confidence) + base_w, base_w)

    # Each reduction streams the native-dtype VMEM tile; the f32 cast is fused
    # into the pass, so no persistent (BN, C) f32 temporary stays live.
    m = jnp.max(x_ref[...], axis=-1, keepdims=True).astype(jnp.float32)  # (BN,1)
    sum_exp = jnp.sum(jnp.exp(x_ref[...].astype(jnp.float32) - m),
                      axis=-1, keepdims=True)                            # (BN,1)
    wsum = jnp.sum(w * x_ref[...].astype(jnp.float32),
                   axis=-1, keepdims=True)                               # (BN,1)

    # logprob = x - m - lse  =>  per-row loss = (m + lse) - sum_c(w_c * x_c)
    loss = (m + jnp.log(sum_exp)) - wsum                                 # (BN,1)

    if ragged:  # trace-time gate: only emitted when the last block overruns N
        row = (jax.lax.broadcasted_iota(jnp.int32, (bn, 1), 0)
               + pl.program_id(0) * block_n)
        loss = jnp.where(row < n_total, loss, 0.0)   # strictly per-row, pre-store

    out_ref[...] = loss


def _vmem_info():
    """(physical VMEM bytes, working-set budget for the streamed tiles)."""
    try:
        cap = int(pltpu.get_tpu_info().vmem_capacity_bytes)
    except Exception:
        cap = 64 << 20                      # conservative (v7x-sized) fallback
    if cap >= (100 << 20):                  # v5e / v6e: 128 MiB physical
        budget = 48 << 20
    else:                                   # v7x: 64 MiB physical / 32 scoped
        budget = 24 << 20
    return cap, budget


def _auto_block_n(n, c, itemsize, budget):
    # Live bytes per row: double-buffered native logits tile + one streamed
    # f32 reduction temporary + targets / per-row-loss side streams.
    per_row = 2 * c * itemsize + 4 * c + 32
    rows = max(8, (budget // max(1, per_row)) // 8 * 8)
    return min(rows, n)


def label_smoothing_cross_entropy(x, target, smoothing=0.1, block_n=None):
    """x: (N, C) float logits (native dtype), target: (N,) int ids -> scalar."""
    n, c = x.shape
    itemsize = jnp.dtype(x.dtype).itemsize
    vmem_cap, budget = _vmem_info()

    if block_n is None:
        block_n = _auto_block_n(n, c, itemsize, budget)
    else:
        block_n = min(int(block_n), n)
        if block_n < n:                            # keep (8,128) tiling rule
            block_n = min(max(8, (block_n // 8) * 8), n)

    grid = (pl.cdiv(n, block_n),)
    n_pad = grid[0] * block_n
    ragged = (n % block_n) != 0

    # Targets as a (N, 1) int32 column so each block is a (block_n, 1) tile.
    tgt = target.astype(jnp.int32).reshape(n, 1)

    live = (2 * block_n * c * itemsize             # double-buffered logits tile
            + 4 * block_n * c                      # streamed f32 reduction temp
            + 2 * block_n * 8)                     # targets + per-row losses
    vmem_limit = int(min(max(live + (8 << 20), 16 << 20), (vmem_cap * 3) // 4))

    kernel = functools.partial(
        _ls_ce_kernel,
        smoothing=float(smoothing),
        inv_c=1.0 / c,
        n_total=n,
        block_n=block_n,
        ragged=ragged,
    )

    per_row_loss = pl.pallas_call(
        kernel,
        out_shape=jax.ShapeDtypeStruct((n_pad, 1), jnp.float32),
        grid_spec=pltpu.PrefetchScalarGridSpec(
            num_scalar_prefetch=0,
            grid=grid,
            in_specs=[
                pl.BlockSpec((block_n, c), lambda i: (i, 0)),   # logits tile
                pl.BlockSpec((block_n, 1), lambda i: (i, 0)),   # targets tile
            ],
            out_specs=pl.BlockSpec((block_n, 1), lambda i: (i, 0)),
        ),
        compiler_params=pltpu.CompilerParams(
            dimension_semantics=("parallel",),      # independent blocks -> both TCs
            vmem_limit_bytes=vmem_limit,
        ),
        cost_estimate=pl.CostEstimate(
            flops=6 * n * c,
            transcendentals=n * c,
            bytes_accessed=n * c * itemsize + n * 4 + n_pad * 4,
        ),
    )(x, tgt)

    # Padding rows (if any) were masked to 0 in-kernel; divide by the true N.
    return jnp.sum(per_row_loss) * jnp.float32(1.0 / n)


def _reference(x, target, smoothing=0.1):
    """Pure-JAX reference mirroring the PyTorch module."""
    confidence = 1.0 - smoothing
    logprobs = jax.nn.log_softmax(x.astype(jnp.float32), axis=-1)
    nll = -jnp.take_along_axis(logprobs, target[:, None], axis=-1)[:, 0]
    smooth = -jnp.mean(logprobs, axis=-1)
    return jnp.mean(confidence * nll + smoothing * smooth)


if __name__ == "__main__":
    key = jax.random.PRNGKey(0)
    kx, kt, kx2, kt2 = jax.random.split(key, 4)

    # small shapes: batch=16, classes=32; block_n=8 -> 2 grid steps, which
    # exercises the tiled / parallel per-block output path.
    N, C = 16, 32
    x = jax.random.normal(kx, (N, C), dtype=jnp.float32)
    target = jax.random.randint(kt, (N,), 0, C, dtype=jnp.int32)
    loss = jax.block_until_ready(
        label_smoothing_cross_entropy(x, target, smoothing=0.1, block_n=8))
    ref = _reference(x, target, smoothing=0.1)
    assert jnp.allclose(loss, ref, atol=1e-5, rtol=1e-5), (loss, ref)

    # ragged batch (last block partially out of bounds) checks the trace-time
    # gated row mask and the divide-by-true-N finalize in the wrapper.
    N2 = 20
    x2 = jax.random.normal(kx2, (N2, C), dtype=jnp.float32)
    target2 = jax.random.randint(kt2, (N2,), 0, C, dtype=jnp.int32)
    loss2 = jax.block_until_ready(
        label_smoothing_cross_entropy(x2, target2, smoothing=0.1, block_n=8))
    ref2 = _reference(x2, target2, smoothing=0.1)
    assert jnp.allclose(loss2, ref2, atol=1e-5, rtol=1e-5), (loss2, ref2)

    # bf16 logits: kernel streams the native-dtype tile (no persistent f32 copy).
    x3 = x.astype(jnp.bfloat16)
    loss3 = jax.block_until_ready(
        label_smoothing_cross_entropy(x3, target, smoothing=0.1, block_n=8))
    ref3 = _reference(x3, target, smoothing=0.1)
    assert jnp.allclose(loss3, ref3, atol=1e-3, rtol=1e-3), (loss3, ref3)

    print("KERNEL_OK")
</pallas_src>

<mosaic_0001>
module attributes {stable_mosaic.version = 11 : i64} {
  func.func @_ls_ce_kernel(%arg0: i32, %arg1: memref<8x32xf32, #tpu.memory_space<vmem>>, %arg2: memref<8x1xi32, #tpu.memory_space<vmem>>, %arg3: memref<8x1xf32, #tpu.memory_space<vmem>>) attributes {dimension_semantics = [#tpu.dimension_semantics<parallel>], iteration_bounds = array<i64: 2>, scalar_prefetch = 0 : i64, scratch_operands = 0 : i64, tpu.core_type = #tpu.core_type<tc>, window_params = [{transform_indices = @transform_0, window_bounds = array<i64: 8, 32>}, {transform_indices = @transform_1, window_bounds = array<i64: 8, 1>}, {transform_indices = @transform_2, window_bounds = array<i64: 8, 1>}]} {
    %0 = tpu.iota {dimensions = array<i32: 1>} : vector<1x32xi32>
    %c0 = arith.constant 0 : index
    %c0_0 = arith.constant 0 : index
    %1 = vector.load %arg2[%c0, %c0_0] : memref<8x1xi32, #tpu.memory_space<vmem>>, vector<8x1xi32>
    %2 = vector.broadcast %0 : vector<1x32xi32> to vector<8x32xi32>
    %3 = vector.broadcast %1 : vector<8x1xi32> to vector<8x32xi32>
    %4 = arith.cmpi eq, %2, %3 : vector<8x32xi32>
    %cst = arith.constant 0.899999976 : f32
    %cst_1 = arith.constant 3.125000e-03 : f32
    %5 = arith.addf %cst, %cst_1 : f32
    %cst_2 = arith.constant 3.125000e-03 : f32
    %6 = vector.broadcast %5 : f32 to vector<8x32xf32>
    %7 = vector.broadcast %cst_2 : f32 to vector<8x32xf32>
    %8 = arith.select %4, %6, %7 : vector<8x32xi1>, vector<8x32xf32>
    %c0_3 = arith.constant 0 : index
    %c0_4 = arith.constant 0 : index
    %9 = vector.load %arg1[%c0_3, %c0_4] : memref<8x32xf32, #tpu.memory_space<vmem>>, vector<8x32xf32>
    %cst_5 = arith.constant dense<0xFF800000> : vector<8xf32>
    %10 = vector.multi_reduction <maximumf>, %9, %cst_5 [1] : vector<8x32xf32> to vector<8xf32>
    %11 = vector.shape_cast %10 : vector<8xf32> to vector<8x1xf32>
    %c0_6 = arith.constant 0 : index
    %c0_7 = arith.constant 0 : index
    %12 = vector.load %arg1[%c0_6, %c0_7] : memref<8x32xf32, #tpu.memory_space<vmem>>, vector<8x32xf32>
    %13 = vector.broadcast %11 : vector<8x1xf32> to vector<8x32xf32>
    %14 = arith.subf %12, %13 : vector<8x32xf32>
    %15 = math.exp %14 : vector<8x32xf32>
    %cst_8 = arith.constant dense<0.000000e+00> : vector<8xf32>
    %16 = vector.multi_reduction <add>, %15, %cst_8 [1] : vector<8x32xf32> to vector<8xf32>
    %17 = vector.shape_cast %16 : vector<8xf32> to vector<8x1xf32>
    %c0_9 = arith.constant 0 : index
    %c0_10 = arith.constant 0 : index
    %18 = vector.load %arg1[%c0_9, %c0_10] : memref<8x32xf32, #tpu.memory_space<vmem>>, vector<8x32xf32>
    %19 = arith.mulf %8, %18 : vector<8x32xf32>
    %cst_11 = arith.constant dense<0.000000e+00> : vector<8xf32>
    %20 = vector.multi_reduction <add>, %19, %cst_11 [1] : vector<8x32xf32> to vector<8xf32>
    %21 = vector.shape_cast %20 : vector<8xf32> to vector<8x1xf32>
    %22 = math.log %17 : vector<8x1xf32>
    %23 = arith.addf %11, %22 : vector<8x1xf32>
    %24 = arith.subf %23, %21 : vector<8x1xf32>
    %c0_12 = arith.constant 0 : index
    %c0_13 = arith.constant 0 : index
    %25 = vector.load %arg3[%c0_12, %c0_13] : memref<8x1xf32, #tpu.memory_space<vmem>>, vector<8x1xf32>
    tpu.vector_store %arg3[%c0_12, %c0_13], %24 {strides = array<i32>} : memref<8x1xf32, #tpu.memory_space<vmem>>, vector<8x1xf32>,
    return
  }
  func.func @transform_0(%arg0: i32) -> (i32, i32) {
    %c0_i32 = arith.constant 0 : i32
    %c0_i32_0 = arith.constant 0 : i32
    return %arg0, %c0_i32 : i32, i32
  }
  func.func @transform_1(%arg0: i32) -> (i32, i32) {
    %c0_i32 = arith.constant 0 : i32
    %c0_i32_0 = arith.constant 0 : i32
    return %arg0, %c0_i32 : i32, i32
  }
  func.func @transform_2(%arg0: i32) -> (i32, i32) {
    %c0_i32 = arith.constant 0 : i32
    %c0_i32_0 = arith.constant 0 : i32
    return %arg0, %c0_i32 : i32, i32
  }
}

</mosaic_0001>

<llo_original>
// kernel: tpu_custom_call.1
$region0: #{tpu_custom_call.1}
  #allocation0 [shape = 'u32[]', space=smem, size = 0x4, offset = 0x4, fixed_abs, tag = 'smem constant byte address 0x4 - core index']
  #allocation1 [shape = 'u32[144,128]{1,0:T(1,128)}', space=vmem, size = 0x12000, scoped, tag = 'internal scratch']
  %s0 = inlined_call_operand.vmem [shape: f32[16,32], index: 0, kind: input, shape index: {}]
  %s1 = inlined_call_operand.vmem [shape: s32[16,1], index: 1, kind: input, shape index: {}]
  %s2 = inlined_call_operand.vmem [shape: f32[16,1], index: 2, kind: output, shape index: {}]
  %s3 = sld [smem:[#allocation0]]
  $region41: #{tpu_custom_call.1} parent=0
    _
  %s5 = ssub.s32 1, %s3
  %s6 = scalar_select 0, %s5, %s3
  loop: start=0, step=1, limit=4
  $region2: #{tpu_custom_call.1} parent=0 // loop_pre_header
    _
  $region3: #{tpu_custom_call.1} parent=0 // loop_header
    %s8 = sphi 0, %s12
    %p9 = scmp.ge.s32.totalorder %s8, 4
    %s18 = sphi 0, %s20
    %s21 = sphi 0, %s18
    %s22 = sphi 0, %s21
    %s38 = sphi 0, %s22
    %s44 = sphi 0, %s46
    %s47 = sphi 0, %s44
    %s48 = sphi 0, %s47
    %s64 = sphi 0, %s48
    %s70 = sphi 0, %s72
    %s73 = sphi 0, %s70
    %s74 = sphi 0, %s73
    %s90 = sphi 0, %s74
  $region4: #{tpu_custom_call.1} parent=0 // loop_header_branch
    %11 = sbr.rel (%p9) target = $region8
  $region5: #{tpu_custom_call.1} parent=0 // loop_body
    %s13 = ssub.s32 %s8, 1
    %s14 = ssub.s32 %s8, 2
    %s15 = sadd.s32 %s8, 1
    %s16 = ssub.s32 %s8, %s15
    %p17 = scmp.eq.s32.totalorder %s16, 0
    %s19 = sadd.s32 %s18, 1
    %s20 = scalar_select %p17, %s18, %s19
    %p23 = pneg %p17
    %p24 = scmp.eq.s32.totalorder %s8, 1
    %p25 = por %p23, %p24
    %p26 = scmp.ne.s32.totalorder %s18, %s21
    %p27 = scmp.eq.s32.totalorder %s8, 0
    %p28 = por %p26, %p27
    %p29 = scmp.ne.s32.totalorder %s18, %s21
    %p30 = scmp.eq.s32.totalorder %s13, 1
    %p31 = por %p29, %p30
    %p32 = scmp.ne.s32.totalorder %s21, %s22
    %p33 = scmp.eq.s32.totalorder %s13, 0
    %p34 = por %p32, %p33
    %p35 = scmp.ne.s32.totalorder %s21, %s22
    %p36 = scmp.eq.s32.totalorder %s14, 1
    %p37 = por %p35, %p36
    %p39 = scmp.ne.s32.totalorder %s22, %s38
    %p40 = scmp.eq.s32.totalorder %s14, 0
    %p41 = por %p39, %p40
    %s42 = ssub.s32 %s8, %s15
    %p43 = scmp.eq.s32.totalorder %s42, 0
    %s45 = sadd.s32 %s44, 1
    %s46 = scalar_select %p43, %s44, %s45
    %p49 = pneg %p43
    %p50 = scmp.eq.s32.totalorder %s8, 1
    %p51 = por %p49, %p50
    %p52 = scmp.ne.s32.totalorder %s44, %s47
    %p53 = scmp.eq.s32.totalorder %s8, 0
    %p54 = por %p52, %p53
    %p55 = scmp.ne.s32.totalorder %s44, %s47
    %p56 = scmp.eq.s32.totalorder %s13, 1
    %p57 = por %p55, %p56
    %p58 = scmp.ne.s32.totalorder %s47, %s48
    %p59 = scmp.eq.s32.totalorder %s13, 0
    %p60 = por %p58, %p59
    %p61 = scmp.ne.s32.totalorder %s47, %s48
    %p62 = scmp.eq.s32.totalorder %s14, 1
    %p63 = por %p61, %p62
    %p65 = scmp.ne.s32.totalorder %s48, %s64
    %p66 = scmp.eq.s32.totalorder %s14, 0
    %p67 = por %p65, %p66
    %s68 = ssub.s32 %s8, %s15
    %p69 = scmp.eq.s32.totalorder %s68, 0
    %s71 = sadd.s32 %s70, 1
    %s72 = scalar_select %p69, %s70, %s71
    %p75 = pneg %p69
    %p76 = scmp.eq.s32.totalorder %s8, 1
    %p77 = por %p75, %p76
    %p78 = scmp.ne.s32.totalorder %s70, %s73
    %p79 = scmp.eq.s32.totalorder %s8, 0
    %p80 = por %p78, %p79
    %p81 = scmp.ne.s32.totalorder %s70, %s73
    %p82 = scmp.eq.s32.totalorder %s13, 1
    %p83 = por %p81, %p82
    %p84 = scmp.ne.s32.totalorder %s73, %s74
    %p85 = scmp.eq.s32.totalorder %s13, 0
    %p86 = por %p84, %p85
    %p87 = scmp.ne.s32.totalorder %s73, %s74
    %p88 = scmp.eq.s32.totalorder %s14, 1
    %p89 = por %p87, %p88
    %p91 = scmp.ne.s32.totalorder %s74, %s90
    %p92 = scmp.eq.s32.totalorder %s14, 0
    %p93 = por %p91, %p92
    %p94 = scmp.le.s32.totalorder 1, %s8
    %p95 = scmp.lt.s32.totalorder %s8, 3
    %p96 = pnand %p94, %p95
    %p97 = pneg %p96
    // Predicated region
    $region9: #{tpu_custom_call.1} parent=5 // pred_check
      _
    $region10: #{tpu_custom_call.1} parent=5 // pred_check_branch
      %99 = sbr.rel (%p96) target = $region12
    $region11: #{tpu_custom_call.1} parent=5 // pred_region
      %s100 = ssub.s32 %s8, 1
    $region12: #{tpu_custom_call.1} parent=5 // pred_fallthru
      _
    %p101 = scmp.lt.s32.totalorder %s8, 2
    // Predicated region
    $region13: #{tpu_custom_call.1} parent=5 // pred_check
      %p102 = pneg %p101
    $region14: #{tpu_custom_call.1} parent=5 // pred_check_branch
      %104 = sbr.rel (%p102) target = $region16
    $region15: #{tpu_custom_call.1} parent=5 // pred_region
      // Predicated region
      $region17: #{tpu_custom_call.1} parent=15 // pred_check
        %p105 = pneg %p28
      $region18: #{tpu_custom_call.1} parent=15 // pred_check_branch
        %107 = sbr.rel (%p105) target = $region20
      $region19: #{tpu_custom_call.1} parent=15 // pred_region
        %p108 = scmp.lt.s32.totalorder %s8, 1
        %s109 = scalar_select %p108, %s8, 1
        %s110 = smul.addr %s109, 8
        %s111 = scalar_lea.vmem %s0, %s110
      $region20: #{tpu_custom_call.1} parent=15 // pred_fallthru
        _
      // Predicated region
      $region21: #{tpu_custom_call.1} parent=15 // pred_check
        %p112 = pneg %p54
      $region22: #{tpu_custom_call.1} parent=15 // pred_check_branch
        %114 = sbr.rel (%p112) target = $region24
      $region23: #{tpu_custom_call.1} parent=15 // pred_region
        %p115 = scmp.lt.s32.totalorder %s8, 1
        %s116 = scalar_select %p115, %s8, 1
        %s117 = smul.addr %s116, 8
        %s118 = scalar_lea.vmem %s1, %s117
      $region24: #{tpu_custom_call.1} parent=15 // pred_fallthru
        _
    $region16: #{tpu_custom_call.1} parent=5 // pred_fallthru
      _
    %p119 = scmp.le.s32.totalorder 1, %s8
    %p120 = scmp.lt.s32.totalorder %s8, 3
    %p121 = pnand %p119, %p120
    %p122 = pneg %p121
    // Predicated region
    $region25: #{tpu_custom_call.1} parent=5 // pred_check
      _
    $region26: #{tpu_custom_call.1} parent=5 // pred_check_branch
      %124 = sbr.rel (%p121) target = $region28
    $region27: #{tpu_custom_call.1} parent=5 // pred_region
      %s125 = ssub.s32 %s8, 1
      %p126 = scmp.lt.s32.totalorder %s13, 1
      %s127 = scalar_select %p126, %s13, 1
      %s128 = smul.addr %s127, 8
      %s129 = scalar_lea.vmem %s0, %s128
      %p130 = pneg %p34
      %p131 = pneg %p31
      %p132 = scmp.lt.s32.totalorder %s13, 1
      %s133 = scalar_select %p132, %s13, 1
      %s134 = smul.addr %s133, 8
      %s135 = scalar_lea.vmem %s1, %s134
      %p136 = pneg %p60
      %p137 = pneg %p57
      %p138 = pneg %p86
      %p139 = pneg %p83
      %p140 = scmp.lt.s32.totalorder %s13, 1
      %s141 = scalar_select %p140, %s13, 1
      %s142 = smul.addr %s141, 8
      %s143 = scalar_lea.vmem %s2, %s142
      %p144 = scmp.lt.s32.totalorder %s13, 1
      %s145 = scalar_select %p144, %s13, 1
      %s146 = smul.addr %s145, 8
      %s147 = scalar_lea.vmem %s0, %s146
      %p148 = scmp.lt.s32.totalorder %s13, 1
      %s149 = scalar_select %p148, %s13, 1
      %s150 = smul.addr %s149, 8
      %s151 = scalar_lea.vmem %s1, %s150
      %p152 = scmp.lt.s32.totalorder %s13, 1
      %s153 = scalar_select %p152, %s13, 1
      %s154 = smul.addr %s153, 8
      %s155 = scalar_lea.vmem %s2, %s154
      %v156 = vlaneseq
      %v157 = vand.u32 %v156, 127
      %v158 = vld [vmem:[%s151] sm:$0xff]
      %159 = vset.pattern.permute.xlu0 0
      %160 = vperm.xlu0 %159, %v158
      %v161 = vpop.permute.xlu0 %160
      %vm162 = vcmp.eq.s32.totalorder %v157, %v161
      %v163 = vsel %vm162, 0.903125, 0.003125
      %v164 = vld [vmem:[%s147] sm:$0xff]
      %vm165 = vcmask 261120
      %v166 = vsel %vm165, %v164, -inf
      %167 = vmax.xlane.f32.xlu0 %v166
      %v168 = vpop.xlane.xlu0 %167
      %v169 = vsub.f32 %v164, %v168
      %v170 = vmul.f32 %v169, 1.442695
      %v171 = vpow.pop %v170
      %v172 = vsel %vm165, %v171, 0.0
      %173 = vadd.xlane.f32.xlu0 %v172
      %v174 = vpop.xlane.xlu0 %173
      %v175 = vmul.f32 %v163, %v164
      %v176 = vsel %vm165, %v175, 0.0
      %177 = vadd.xlane.f32.xlu0 %v176
      %v178 = vpop.xlane.xlu0 %177
      %v179 = vlog2.pop %v174
      %v180 = vmul.f32 %v179, 0.6931472
      %v181 = vadd.f32 %v168, %v180
      %v182 = vsub.f32 %v181, %v178
      %vm183 = vcmask 7168
      %184 = vst.msk [vmem:[%s155] sm:$0xff] %vm183, %v182
      %p185 = scmp.lt.s32.totalorder %s13, 1
      %s186 = scalar_select %p185, %s13, 1
      %s187 = smul.addr %s186, 8
      %s188 = scalar_lea.vmem %s2, %s187
      // Predicated region
      $region29: #{tpu_custom_call.1} parent=27 // pred_check
        %p189 = pneg %p83
      $region30: #{tpu_custom_call.1} parent=27 // pred_check_branch
        %191 = sbr.rel (%p189) target = $region32
      $region31: #{tpu_custom_call.1} parent=27 // pred_region
        _
      $region32: #{tpu_custom_call.1} parent=27 // pred_fallthru
        _
    $region28: #{tpu_custom_call.1} parent=5 // pred_fallthru
      _
    %p192 = scmp.le.s32.totalorder 2, %s8
    // Predicated region
    $region33: #{tpu_custom_call.1} parent=5 // pred_check
      %p193 = pneg %p192
    $region34: #{tpu_custom_call.1} parent=5 // pred_check_branch
      %195 = sbr.rel (%p193) target = $region36
    $region35: #{tpu_custom_call.1} parent=5 // pred_region
      %s196 = ssub.s32 %s8, 2
      // Predicated region
      $region37: #{tpu_custom_call.1} parent=35 // pred_check
        %p197 = pneg %p89
      $region38: #{tpu_custom_call.1} parent=35 // pred_check_branch
        %199 = sbr.rel (%p197) target = $region40
      $region39: #{tpu_custom_call.1} parent=35 // pred_region
        %p200 = scmp.lt.s32.totalorder %s14, 1
        %s201 = scalar_select %p200, %s14, 1
        %s202 = smul.addr %s201, 8
        %s203 = scalar_lea.vmem %s2, %s202
      $region40: #{tpu_custom_call.1} parent=35 // pred_fallthru
        _
    $region36: #{tpu_custom_call.1} parent=5 // pred_fallthru
      _
  $region6: #{tpu_custom_call.1} parent=0 // loop_footer
    %s12 = sadd.s32 1, %s8
  $region7: #{tpu_custom_call.1} parent=0 // loop_footer_branch
    %7 = sbr.rel target = $region3
  $region8: #{tpu_custom_call.1} parent=0 // loop_exit
    _

</llo_original>
